<compile_context>
chip_gen: v7x
topology: tpu7x:2x2x1
jax: 0.10.0
libtpu: 0.0.40
codegen_flags: <defaults>
</compile_context>

<pallas_src>
import jax
import jax.numpy as jnp
from jax.experimental import pallas as pl
from jax.experimental.pallas import tpu as pltpu

LANE_CHOICES = (512, 256, 128)     # lane-dense slab widths (multiples of 128)
FUSED_MAX_BYTES = 2 * 1024 * 1024  # single-pass path threshold (input bytes)


def _round_up(a, b):
    return ((a + b - 1) // b) * b


def _pick_max_block_rows():
    """4 MiB f32 blocks on v7x (32 MiB scoped VMEM, ~3.2 TB/s HBM), 2 MiB elsewhere."""
    try:
        kind = jax.devices()[0].device_kind.lower()
        if "v7" in kind or "7x" in kind:
            return 2048
    except Exception:
        pass
    return 1024


def _fused_kernel(x_ref, o_ref):
    # Whole array resident in VMEM: sumsq + rsqrt + scale in one shot.
    x = x_ref[...].astype(jnp.float32)
    inv = jax.lax.rsqrt(jnp.sum(x * x))
    # TODO(synk): no eps guard for an all-zero input (matches the reference).
    o_ref[...] = (x * inv).astype(o_ref.dtype)


@jax.jit
def frobenius_normalize(x):
    orig_shape = x.shape
    orig_dtype = x.dtype
    n = x.size
    itemsize = jnp.dtype(orig_dtype).itemsize

    flat = x.reshape(-1)

    # ---- choose a lane-dense 2-D slab layout without padding if possible ----
    cols = next((c for c in LANE_CHOICES if n % c == 0), None)
    if cols is None:
        # TODO(synk): element counts not divisible by 128 take a pad + final
        # slice path (one extra HBM copy); rare for realistic tensor sizes.
        cols = LANE_CHOICES[0]
        n_pad = _round_up(n, cols)
        flat = jnp.pad(flat, (0, n_pad - n))  # zeros don't affect sum of squares
        padded = True
    else:
        n_pad = n
        padded = False
    rows = n_pad // cols
    x2d = flat.reshape(rows, cols)

    if n_pad * itemsize <= FUSED_MAX_BYTES:
        # -------- fused single-pass fast path (whole slab in VMEM) --------
        y2d = pl.pallas_call(
            _fused_kernel,
            out_shape=jax.ShapeDtypeStruct((rows, cols), orig_dtype),
            grid=(1,),
            in_specs=[pl.BlockSpec((rows, cols), lambda i: (0, 0))],
            out_specs=pl.BlockSpec((rows, cols), lambda i: (0, 0)),
        )(x2d)
    else:
        # ------------------------- two-pass path ---------------------------
        granule = max(8, 32 // itemsize)          # sublane packing: 8/16/32
        block_rows = min(_pick_max_block_rows(), _round_up(rows, granule))
        steps = pl.cdiv(rows, block_rows)
        ncores = 2 if steps >= 2 else 1           # 2-way TC split on v7x
        spc = pl.cdiv(steps, ncores)              # steps per core (ceil)
        last_block = steps - 1
        ragged = (rows % block_rows) != 0

        # ---- Pass 1: per-core (8, cols) vector partial sums of squares ----
        def _sumsq_kernel(x_ref, out_ref):
            c = pl.program_id(0)
            j = pl.program_id(1)

            @pl.when(j == 0)
            def _():
                out_ref[...] = jnp.zeros_like(out_ref)

            step = c * spc + j

            @pl.when(step < steps)
            def _():
                xv = x_ref[...].astype(jnp.float32)
                xsq = xv * xv
                if ragged:
                    # Mask rows past the end of the array (last block only
                    # matters; compare is (block_rows, 1) -> cheap broadcast).
                    row_ids = jax.lax.broadcasted_iota(
                        jnp.int32, (block_rows, 1), 0)
                    xsq = jnp.where(step * block_rows + row_ids < rows,
                                    xsq, 0.0)
                # Lane-preserving accumulate: defer cross-lane collapse to
                # pass 2 (no per-step XLU reduce / scalar RMW chain).
                out_ref[...] += jnp.sum(
                    xsq.reshape(block_rows // 8, 8, cols), axis=0)

        partials = pl.pallas_call(
            _sumsq_kernel,
            out_shape=jax.ShapeDtypeStruct((8 * ncores, cols), jnp.float32),
            grid=(ncores, spc),
            in_specs=[
                pl.BlockSpec(
                    (block_rows, cols),
                    lambda c, j: (jnp.minimum(c * spc + j, last_block), 0),
                )
            ],
            out_specs=pl.BlockSpec((8, cols), lambda c, j: (c, 0)),
            compiler_params=pltpu.CompilerParams(
                dimension_semantics=("parallel", "arbitrary")),
        )(x2d)

        # ---- Pass 2: scale by rsqrt(sum(partials)), rsqrt folded in-kernel ----
        def _normalize_kernel(part_ref, x_ref, o_ref):
            inv = jax.lax.rsqrt(jnp.sum(part_ref[...]))
            # TODO(synk): no eps guard for all-zero input (matches reference).
            o_ref[...] = (x_ref[...].astype(jnp.float32) * inv).astype(o_ref.dtype)

        y2d = pl.pallas_call(
            _normalize_kernel,
            out_shape=jax.ShapeDtypeStruct((rows, cols), orig_dtype),
            grid=(steps,),
            in_specs=[
                pl.BlockSpec((8 * ncores, cols), lambda i: (0, 0)),  # resident
                pl.BlockSpec((block_rows, cols), lambda i: (i, 0)),
            ],
            out_specs=pl.BlockSpec((block_rows, cols), lambda i: (i, 0)),
            compiler_params=pltpu.CompilerParams(
                dimension_semantics=("parallel",)),
        )(partials, x2d)

    if padded:
        y = y2d.reshape(-1)[:n].reshape(orig_shape)
    else:
        y = y2d.reshape(orig_shape)
    return y


if __name__ == "__main__":
    key = jax.random.PRNGKey(0)

    # Test 1: module-sized input (hits the fused single-pass path).
    x = jax.random.normal(key, (2, 4, 16, 16), dtype=jnp.float32)
    y = jax.block_until_ready(frobenius_normalize(x))
    ref = x / jnp.sqrt(jnp.sum(x * x))
    assert y.shape == x.shape and y.dtype == x.dtype
    assert jnp.allclose(y, ref, atol=1e-5, rtol=1e-5), "fused path mismatch"

    # Test 2: larger input hitting the two-pass path with a ragged last block
    # and an odd step count (exercises the 2-core split guard).
    k2 = jax.random.PRNGKey(1)
    x2 = jax.random.normal(k2, (4500, 512), dtype=jnp.float32)
    y2 = jax.block_until_ready(frobenius_normalize(x2))
    ref2 = x2 / jnp.sqrt(jnp.sum(x2 * x2))
    assert y2.shape == x2.shape and y2.dtype == x2.dtype
    assert jnp.allclose(y2, ref2, atol=1e-5, rtol=1e-5), "two-pass mismatch"

    print("KERNEL_OK")
</pallas_src>

<mosaic_0001>
module attributes {stable_mosaic.version = 11 : i64} {
  func.func @_fused_kernel(%arg0: i32, %arg1: memref<4x512xf32, #tpu.memory_space<vmem>>, %arg2: memref<4x512xf32, #tpu.memory_space<vmem>>) attributes {dimension_semantics = [#tpu.dimension_semantics<arbitrary>], iteration_bounds = array<i64: 1>, scalar_prefetch = 0 : i64, scratch_operands = 0 : i64, tpu.core_type = #tpu.core_type<tc>, window_params = [{pipeline_mode = #tpu.pipeline_mode<synchronous>, transform_indices = @transform_0, window_bounds = array<i64: 4, 512>}, {pipeline_mode = #tpu.pipeline_mode<synchronous>, transform_indices = @transform_1, window_bounds = array<i64: 4, 512>}]} {
    %c0 = arith.constant 0 : index
    %c0_0 = arith.constant 0 : index
    %0 = vector.load %arg1[%c0, %c0_0] : memref<4x512xf32, #tpu.memory_space<vmem>>, vector<4x512xf32>
    %1 = arith.mulf %0, %0 : vector<4x512xf32>
    %2 = vector.shape_cast %1 : vector<4x512xf32> to vector<1x4x512xf32>
    %cst = arith.constant dense<0.000000e+00> : vector<1xf32>
    %3 = vector.multi_reduction <add>, %2, %cst [1, 2] : vector<1x4x512xf32> to vector<1xf32>
    %4 = vector.shape_cast %3 : vector<1xf32> to vector<1x1x1xf32>
    %5 = vector.extract %4[0, 0, 0] : f32 from vector<1x1x1xf32>
    %6 = math.rsqrt %5 : f32
    %7 = vector.broadcast %6 : f32 to vector<4x512xf32>
    %8 = arith.mulf %0, %7 : vector<4x512xf32>
    %c0_1 = arith.constant 0 : index
    %c0_2 = arith.constant 0 : index
    %9 = vector.load %arg2[%c0_1, %c0_2] : memref<4x512xf32, #tpu.memory_space<vmem>>, vector<4x512xf32>
    tpu.vector_store %arg2[%c0_1, %c0_2], %8 {strides = array<i32>} : memref<4x512xf32, #tpu.memory_space<vmem>>, vector<4x512xf32>,
    return
  }
  func.func @transform_0(%arg0: i32) -> (i32, i32) {
    %c0_i32 = arith.constant 0 : i32
    %c0_i32_0 = arith.constant 0 : i32
    %c0_i32_1 = arith.constant 0 : i32
    return %c0_i32, %c0_i32_0 : i32, i32
  }
  func.func @transform_1(%arg0: i32) -> (i32, i32) {
    %c0_i32 = arith.constant 0 : i32
    %c0_i32_0 = arith.constant 0 : i32
    %c0_i32_1 = arith.constant 0 : i32
    return %c0_i32, %c0_i32_0 : i32, i32
  }
}

</mosaic_0001>

<llo_original>
// kernel: frobenius_normalize.1
$region0: #{frobenius_normalize.1}
  #allocation0 [shape = 'u32[]', space=smem, size = 0x4, offset = 0x4, fixed_abs, tag = 'smem constant byte address 0x4 - core index']
  #allocation1 [shape = 'u32[144,128]{1,0:T(1,128)}', space=vmem, size = 0x12000, scoped, tag = 'internal scratch']
  %s0 = inlined_call_operand.vmem [shape: f32[4,512], index: 0, kind: input, shape index: {}]
  %s1 = inlined_call_operand.vmem [shape: f32[4,512], index: 1, kind: output, shape index: {}]
  %s2 = sld [smem:[#allocation0]]
  $region14: #{frobenius_normalize.1} parent=0
    _
  %s4 = ssub.s32 1, %s2
  %s5 = scalar_select 0, %s4, %s2
  // Predicated region
  $region2: #{frobenius_normalize.1} parent=0 // pred_check
    _
  $region3: #{frobenius_normalize.1} parent=0 // pred_check_branch
    %7 = sbr.rel (0) target = $region5
  $region4: #{frobenius_normalize.1} parent=0 // pred_region
    _
  $region5: #{frobenius_normalize.1} parent=0 // pred_fallthru
    _
  %v8 = vld [vmem:[%s0] sm:$0xff]
  %v9 = vld [vmem:[%s0 + $0x8] sm:$0xff]
  %v10 = vmul.f32 %v8, %v8
  %v11 = vmul.f32 %v9, %v9
  %v14 = vcombine.high %v10, %v10
  %v15 = vcombine.high %v11, %v11
  %vm18 = vcmask 1043456
  %v19 = vsel %vm18, %v10, 0.0
  %v20 = vsel %vm18, %v14, 0.0
  %v21 = vadd.f32 %v19, %v20
  %v22 = vsel %vm18, %v11, 0.0
  %v23 = vadd.f32 %v21, %v22
  %v24 = vsel %vm18, %v15, 0.0
  %v25 = vadd.f32 %v23, %v24
  %26 = vadd.xlane.f32.xlu0 %v25
  %v27 = vpop.xlane.xlu0 %26
  %v28 = vrot.slane %v27, 4
  %v29 = vadd.f32 %v27, %v28
  %v30 = vrot.slane %v29, 2
  %v31 = vadd.f32 %v29, %v30
  %v32 = vrot.slane %v31, 1
  %v33 = vadd.f32 %v31, %v32
  %s34 = vtos %v33
  %v35 = vstv %s34
  %v36 = vrsqrt.pop %v35
  %s37 = vtos %v36
  %v38 = vstv %s37
  %v39 = vmul.f32 %v8, %v38
  %v40 = vmul.f32 %v9, %v38
  %41 = vst [vmem:[%s1] sm:$0xff] %v39
  %42 = vst [vmem:[%s1 + $0x8] sm:$0xff] %v40
  // Predicated region
  $region6: #{frobenius_normalize.1} parent=0 // pred_check
    _
  $region7: #{frobenius_normalize.1} parent=0 // pred_check_branch
    %44 = sbr.rel (0) target = $region9
  $region8: #{frobenius_normalize.1} parent=0 // pred_region
    _
  $region9: #{frobenius_normalize.1} parent=0 // pred_fallthru
    _
  // Predicated region
  $region10: #{frobenius_normalize.1} parent=0 // pred_check
    _
  $region11: #{frobenius_normalize.1} parent=0 // pred_check_branch
    %46 = sbr.rel (0) target = $region13
  $region12: #{frobenius_normalize.1} parent=0 // pred_region
    _
  $region13: #{frobenius_normalize.1} parent=0 // pred_fallthru
    _

</llo_original>
